<compile_context>
chip_gen: v7x
topology: tpu7x:2x2x1
jax: 0.10.0
libtpu: 0.0.40
codegen_flags: <defaults>
</compile_context>

<pallas_src>
import jax
import jax.numpy as jnp
from jax.experimental import pallas as pl
from jax.experimental.pallas import tpu as pltpu

NUM_CLASS_LIST = [4, 4, 4]
N_OUT = sum(NUM_CLASS_LIST)          # 12
HIDDEN = 100
HIDDEN_PAD = 128                     # lane-aligned hidden width
N_OUT_PAD = 128                      # lane-aligned logits / output width


def _round_up(x, m):
    return ((x + m - 1) // m) * m


# --------------------------------------------------------------------------
# Kernel
# --------------------------------------------------------------------------
def net_kernel(x_ref, w0_ref, b0_ref, wh_ref, bh_ref, mask_ref, o_ref):
    # x:  (B_TILE, num_input)
    # w0: (num_input, 128)   b0: (1, 128)       (HIDDEN zero-padded 100 -> 128)
    # wh: (128, 128)         bh: (1, 128)       (heads zero-padded 12 -> 128)
    # mask: (128, 128) block-diagonal "same head" ones matrix (identity on pad)
    # o:  (B_TILE, 128)
    x = x_ref[...]

    # Layer 0 + ReLU  (full-tile MXU matmul, f32 accumulate)
    h = jnp.dot(x, w0_ref[...], preferred_element_type=jnp.float32) + b0_ref[...]
    h = jnp.maximum(h, 0.0)

    # All three heads in one matmul (columns are the concatenated heads)
    logits = jnp.dot(h, wh_ref[...], preferred_element_type=jnp.float32) + bh_ref[...]

    # Vectorized per-head softmax:
    #   - a single per-row max is a valid (shared) shift for every head
    #   - one exp over the whole 128-lane slab (one EUP pass)
    #   - per-head denominators via one block-diagonal-of-ones matmul
    m = jnp.max(logits, axis=-1, keepdims=True)
    e = jnp.exp(logits - m)
    denom = jnp.dot(e, mask_ref[...], preferred_element_type=jnp.float32)
    # divide on the EUP slot (approx reciprocal, ~1e-3 relative)
    o_ref[...] = e * pl.reciprocal(denom, approx=True)


# --------------------------------------------------------------------------
# Wrapper
# --------------------------------------------------------------------------
def _make_head_mask():
    """(128,128) f32: ones where column/row belong to the same head; identity
    on padded columns so padded lanes normalize to 1 (never inf/nan)."""
    ids = []
    for h, nc in enumerate(NUM_CLASS_LIST):
        ids += [h] * nc
    # give every padded column its own unique id -> identity on the pad block
    ids += list(range(len(NUM_CLASS_LIST), len(NUM_CLASS_LIST) + N_OUT_PAD - N_OUT))
    ids = jnp.asarray(ids, jnp.int32)
    return (ids[:, None] == ids[None, :]).astype(jnp.float32)


def pad_params(w0, b0, w_list, b_list):
    """Zero-pad PyTorch-shaped params to lane-aligned slabs."""
    num_input = w0.shape[0]
    w0_pad = jnp.zeros((num_input, HIDDEN_PAD), jnp.float32).at[:, :HIDDEN].set(w0)
    b0_pad = jnp.zeros((1, HIDDEN_PAD), jnp.float32).at[:, :HIDDEN].set(b0)
    wh = jnp.concatenate(w_list, axis=1)                      # (100, 12)
    bh = jnp.concatenate(b_list)                              # (12,)
    wh_pad = jnp.zeros((HIDDEN_PAD, N_OUT_PAD), jnp.float32).at[:HIDDEN, :N_OUT].set(wh)
    bh_pad = jnp.zeros((1, N_OUT_PAD), jnp.float32).at[:, :N_OUT].set(bh)
    return w0_pad, b0_pad, wh_pad, bh_pad


def net_forward(x, w0_pad, b0_pad, wh_pad, bh_pad, *, b_tile=512):
    B, num_input = x.shape

    # Batch tile: multiple of 8 (sublane), capped at 512 rows.  Per-step VMEM
    # is ~b_tile*(num_input+128+128)*4 B double-buffered -- well under the
    # 32 MiB default scoped VMEM on every generation (v5e/v6e/v7x).
    b_tile = min(b_tile, _round_up(B, 8))
    B_pad = _round_up(B, b_tile)
    if B_pad != B:
        x = jnp.concatenate(
            [x, jnp.zeros((B_pad - B, num_input), x.dtype)], axis=0)

    head_mask = _make_head_mask()
    grid = (B_pad // b_tile,)

    out = pl.pallas_call(
        net_kernel,
        out_shape=jax.ShapeDtypeStruct((B_pad, N_OUT_PAD), jnp.float32),
        grid=grid,
        in_specs=[
            pl.BlockSpec((b_tile, num_input), lambda i: (i, 0)),      # x: streamed
            pl.BlockSpec((num_input, HIDDEN_PAD), lambda i: (0, 0)),  # weights:
            pl.BlockSpec((1, HIDDEN_PAD), lambda i: (0, 0)),          #   VMEM-
            pl.BlockSpec((HIDDEN_PAD, N_OUT_PAD), lambda i: (0, 0)),  #   resident
            pl.BlockSpec((1, N_OUT_PAD), lambda i: (0, 0)),
            pl.BlockSpec((N_OUT_PAD, N_OUT_PAD), lambda i: (0, 0)),
        ],
        out_specs=pl.BlockSpec((b_tile, N_OUT_PAD), lambda i: (i, 0)),
        compiler_params=pltpu.CompilerParams(
            dimension_semantics=("parallel",)),   # megacore-shardable on v7x
    )(x, w0_pad, b0_pad, wh_pad, bh_pad, head_mask)

    # strip batch padding and lane padding
    return out[:B, :N_OUT]


# --------------------------------------------------------------------------
# Param init (PyTorch-style uniform +-1/sqrt(fan_in)) and pure-JAX reference
# --------------------------------------------------------------------------
def init_params(key, num_input):
    k0w, k0b, *hk = jax.random.split(key, 2 + 2 * len(NUM_CLASS_LIST))
    bound0 = 1.0 / jnp.sqrt(num_input)
    w0 = jax.random.uniform(k0w, (num_input, HIDDEN), jnp.float32, -bound0, bound0)
    b0 = jax.random.uniform(k0b, (HIDDEN,), jnp.float32, -bound0, bound0)

    boundh = 1.0 / jnp.sqrt(HIDDEN)
    w_list, b_list = [], []
    for i, nc in enumerate(NUM_CLASS_LIST):
        w_list.append(jax.random.uniform(hk[2 * i], (HIDDEN, nc),
                                         jnp.float32, -boundh, boundh))
        b_list.append(jax.random.uniform(hk[2 * i + 1], (nc,),
                                         jnp.float32, -boundh, boundh))
    return w0, b0, w_list, b_list


def net_reference(x, w0, b0, w_list, b_list):
    h = jnp.maximum(x @ w0 + b0, 0.0)
    outs = [jax.nn.softmax(h @ w + b, axis=-1) for w, b in zip(w_list, b_list)]
    return jnp.concatenate(outs, axis=1)


# --------------------------------------------------------------------------
if __name__ == "__main__":
    key = jax.random.PRNGKey(0)
    kx, kp = jax.random.split(key)

    B = 2
    NUM_INPUT = 32
    x = jax.random.normal(kx, (B, NUM_INPUT), jnp.float32)

    w0, b0, w_list, b_list = init_params(kp, NUM_INPUT)
    w0_pad, b0_pad, wh_pad, bh_pad = pad_params(w0, b0, w_list, b_list)

    out = net_forward(x, w0_pad, b0_pad, wh_pad, bh_pad)
    out = jax.block_until_ready(out)

    assert out.shape == (B, N_OUT)

    # each head's softmax block sums to 1 (approx reciprocal -> ~1e-3 slack)
    sums = out.reshape(B, len(NUM_CLASS_LIST), NUM_CLASS_LIST[0]).sum(-1)
    assert jnp.allclose(sums, 1.0, atol=3e-3), sums

    # match the pure-JAX (PyTorch-equivalent) forward
    ref = net_reference(x, w0, b0, w_list, b_list)
    assert jnp.allclose(out, ref, atol=3e-3, rtol=3e-3), jnp.max(jnp.abs(out - ref))

    print("KERNEL_OK")
</pallas_src>

<mosaic_0001>
module attributes {stable_mosaic.version = 11 : i64} {
  func.func @net_kernel(%arg0: i32, %arg1: memref<8x32xf32, #tpu.memory_space<vmem>>, %arg2: memref<32x128xf32, #tpu.memory_space<vmem>>, %arg3: memref<1x128xf32, #tpu.memory_space<vmem>>, %arg4: memref<128x128xf32, #tpu.memory_space<vmem>>, %arg5: memref<1x128xf32, #tpu.memory_space<vmem>>, %arg6: memref<128x128xf32, #tpu.memory_space<vmem>>, %arg7: memref<8x128xf32, #tpu.memory_space<vmem>>) attributes {dimension_semantics = [#tpu.dimension_semantics<parallel>], iteration_bounds = array<i64: 1>, scalar_prefetch = 0 : i64, scratch_operands = 0 : i64, tpu.core_type = #tpu.core_type<tc>, window_params = [{transform_indices = @transform_0, window_bounds = array<i64: 8, 32>}, {pipeline_mode = #tpu.pipeline_mode<synchronous>, transform_indices = @transform_1, window_bounds = array<i64: 32, 128>}, {pipeline_mode = #tpu.pipeline_mode<synchronous>, transform_indices = @transform_2, window_bounds = array<i64: 1, 128>}, {pipeline_mode = #tpu.pipeline_mode<synchronous>, transform_indices = @transform_3, window_bounds = array<i64: 128, 128>}, {pipeline_mode = #tpu.pipeline_mode<synchronous>, transform_indices = @transform_4, window_bounds = array<i64: 1, 128>}, {pipeline_mode = #tpu.pipeline_mode<synchronous>, transform_indices = @transform_5, window_bounds = array<i64: 128, 128>}, {transform_indices = @transform_6, window_bounds = array<i64: 8, 128>}]} {
    %c0 = arith.constant 0 : index
    %c0_0 = arith.constant 0 : index
    %0 = vector.load %arg1[%c0, %c0_0] : memref<8x32xf32, #tpu.memory_space<vmem>>, vector<8x32xf32>
    %c0_1 = arith.constant 0 : index
    %c0_2 = arith.constant 0 : index
    %1 = vector.load %arg2[%c0_1, %c0_2] : memref<32x128xf32, #tpu.memory_space<vmem>>, vector<32x128xf32>
    %cst = arith.constant dense<0.000000e+00> : vector<8x128xf32>
    %2 = tpu.matmul %0, %1, %cst {dimension_numbers = #tpu.dot_dimension_numbers<[1], [0], [0], [1], [0, 0, 1, 1], [], []>} : vector<8x32xf32>, vector<32x128xf32>, vector<8x128xf32> -> vector<8x128xf32>
    %c0_3 = arith.constant 0 : index
    %c0_4 = arith.constant 0 : index
    %3 = vector.load %arg3[%c0_3, %c0_4] : memref<1x128xf32, #tpu.memory_space<vmem>>, vector<1x128xf32>
    %4 = vector.broadcast %3 : vector<1x128xf32> to vector<8x128xf32>
    %5 = arith.addf %2, %4 : vector<8x128xf32>
    %cst_5 = arith.constant 0.000000e+00 : f32
    %6 = vector.broadcast %cst_5 : f32 to vector<8x128xf32>
    %7 = arith.maximumf %5, %6 : vector<8x128xf32>
    %c0_6 = arith.constant 0 : index
    %c0_7 = arith.constant 0 : index
    %8 = vector.load %arg4[%c0_6, %c0_7] : memref<128x128xf32, #tpu.memory_space<vmem>>, vector<128x128xf32>
    %cst_8 = arith.constant dense<0.000000e+00> : vector<8x128xf32>
    %9 = tpu.matmul %7, %8, %cst_8 {dimension_numbers = #tpu.dot_dimension_numbers<[1], [0], [0], [1], [0, 0, 1, 1], [], []>} : vector<8x128xf32>, vector<128x128xf32>, vector<8x128xf32> -> vector<8x128xf32>
    %c0_9 = arith.constant 0 : index
    %c0_10 = arith.constant 0 : index
    %10 = vector.load %arg5[%c0_9, %c0_10] : memref<1x128xf32, #tpu.memory_space<vmem>>, vector<1x128xf32>
    %11 = vector.broadcast %10 : vector<1x128xf32> to vector<8x128xf32>
    %12 = arith.addf %9, %11 : vector<8x128xf32>
    %cst_11 = arith.constant dense<0xFF800000> : vector<8xf32>
    %13 = vector.multi_reduction <maximumf>, %12, %cst_11 [1] : vector<8x128xf32> to vector<8xf32>
    %14 = vector.shape_cast %13 : vector<8xf32> to vector<8x1xf32>
    %15 = vector.broadcast %14 : vector<8x1xf32> to vector<8x128xf32>
    %16 = arith.subf %12, %15 : vector<8x128xf32>
    %17 = math.exp %16 : vector<8x128xf32>
    %c0_12 = arith.constant 0 : index
    %c0_13 = arith.constant 0 : index
    %18 = vector.load %arg6[%c0_12, %c0_13] : memref<128x128xf32, #tpu.memory_space<vmem>>, vector<128x128xf32>
    %cst_14 = arith.constant dense<0.000000e+00> : vector<8x128xf32>
    %19 = tpu.matmul %17, %18, %cst_14 {dimension_numbers = #tpu.dot_dimension_numbers<[1], [0], [0], [1], [0, 0, 1, 1], [], []>} : vector<8x128xf32>, vector<128x128xf32>, vector<8x128xf32> -> vector<8x128xf32>
    %20 = tpu.reciprocal %19 {approx = true} : vector<8x128xf32> -> vector<8x128xf32>
    %21 = arith.mulf %17, %20 : vector<8x128xf32>
    %c0_15 = arith.constant 0 : index
    %c0_16 = arith.constant 0 : index
    %22 = vector.load %arg7[%c0_15, %c0_16] : memref<8x128xf32, #tpu.memory_space<vmem>>, vector<8x128xf32>
    tpu.vector_store %arg7[%c0_15, %c0_16], %21 {strides = array<i32>} : memref<8x128xf32, #tpu.memory_space<vmem>>, vector<8x128xf32>,
    return
  }
  func.func @transform_0(%arg0: i32) -> (i32, i32) {
    %c0_i32 = arith.constant 0 : i32
    %c0_i32_0 = arith.constant 0 : i32
    return %arg0, %c0_i32 : i32, i32
  }
  func.func @transform_1(%arg0: i32) -> (i32, i32) {
    %c0_i32 = arith.constant 0 : i32
    %c0_i32_0 = arith.constant 0 : i32
    %c0_i32_1 = arith.constant 0 : i32
    return %c0_i32, %c0_i32_0 : i32, i32
  }
  func.func @transform_2(%arg0: i32) -> (i32, i32) {
    %c0_i32 = arith.constant 0 : i32
    %c0_i32_0 = arith.constant 0 : i32
    %c0_i32_1 = arith.constant 0 : i32
    return %c0_i32, %c0_i32_0 : i32, i32
  }
  func.func @transform_3(%arg0: i32) -> (i32, i32) {
    %c0_i32 = arith.constant 0 : i32
    %c0_i32_0 = arith.constant 0 : i32
    %c0_i32_1 = arith.constant 0 : i32
    return %c0_i32, %c0_i32_0 : i32, i32
  }
  func.func @transform_4(%arg0: i32) -> (i32, i32) {
    %c0_i32 = arith.constant 0 : i32
    %c0_i32_0 = arith.constant 0 : i32
    %c0_i32_1 = arith.constant 0 : i32
    return %c0_i32, %c0_i32_0 : i32, i32
  }
  func.func @transform_5(%arg0: i32) -> (i32, i32) {
    %c0_i32 = arith.constant 0 : i32
    %c0_i32_0 = arith.constant 0 : i32
    %c0_i32_1 = arith.constant 0 : i32
    return %c0_i32, %c0_i32_0 : i32, i32
  }
  func.func @transform_6(%arg0: i32) -> (i32, i32) {
    %c0_i32 = arith.constant 0 : i32
    %c0_i32_0 = arith.constant 0 : i32
    return %arg0, %c0_i32 : i32, i32
  }
}

</mosaic_0001>

<llo_original>
// kernel: tpu_custom_call.1
$region0: #{tpu_custom_call.1}
  #allocation0 [shape = 'u32[]', space=smem, size = 0x4, offset = 0x4, fixed_abs, tag = 'smem constant byte address 0x4 - core index']
  #allocation1 [shape = 'u32[144,128]{1,0:T(1,128)}', space=vmem, size = 0x12000, scoped, tag = 'internal scratch']
  %s0 = inlined_call_operand.hbm [shape: f32[8,32], index: 0, kind: input, shape index: {}]
  %s1 = inlined_call_operand.hbm [shape: f32[32,128], index: 1, kind: input, shape index: {}]
  %s2 = inlined_call_operand.vmem [shape: f32[1,128], index: 2, kind: input, shape index: {}]
  %s3 = inlined_call_operand.hbm [shape: f32[128,128], index: 3, kind: input, shape index: {}]
  %s4 = inlined_call_operand.vmem [shape: f32[1,128], index: 4, kind: input, shape index: {}]
  %s5 = inlined_call_operand.hbm [shape: f32[128,128], index: 5, kind: input, shape index: {}]
  %s6 = inlined_call_operand.hbm [shape: f32[8,128], index: 6, kind: output, shape index: {}]
  %s7 = sld [smem:[#allocation0]]
  $region50: #{tpu_custom_call.1} parent=0
    _
  %s9 = ssub.s32 1, %s7
  %s10 = scalar_select 0, %s9, %s7
  $region1: #{tpu_custom_call.1} parent=0
    #allocation2 [shape = 'u8[4096]{0}', space=vmem, size = 0x1000, scoped, tag = 'input window, operand 0, single buffered']
    #allocation3 [shape = 's32[1]{0}', space=sflag, size = 0x4, scoped, tag = 'scoped memory for tpu_custom_call.1']
    #allocation4 [shape = 's32[1]{0}', space=sflag, size = 0x4, scoped, tag = 'scoped memory for tpu_custom_call.1']
    #allocation5 [shape = 'u8[16384]{0}', space=vmem, size = 0x4000, scoped, tag = 'input window, operand 1, single buffered']
    #allocation6 [shape = 's32[1]{0}', space=sflag, size = 0x4, scoped, tag = 'scoped memory for tpu_custom_call.1']
    #allocation7 [shape = 'u8[65536]{0}', space=vmem, size = 0x10000, scoped, tag = 'input window, operand 3, single buffered']
    #allocation8 [shape = 'u8[65536]{0}', space=vmem, size = 0x10000, scoped, tag = 'input window, operand 5, single buffered']
    #allocation9 [shape = 's32[1]{0}', space=sflag, size = 0x4, scoped, tag = 'scoped memory for tpu_custom_call.1']
    #allocation10 [shape = 'u8[4096]{0}', space=vmem, size = 0x1000, scoped, tag = 'output window, operand 0, single buffered']
    %11 = vsyncpa [#allocation3], 0
    %12 = vsyncpa [#allocation6], 0
    %13 = vsyncpa [#allocation9], 0
    %14 = vsyncpa [#allocation4], 0
    // Predicated region
    $region2: #{tpu_custom_call.1} parent=1 // pred_check
      _
    $region3: #{tpu_custom_call.1} parent=1 // pred_check_branch
      %16 = sbr.rel (0) target = $region5
    $region4: #{tpu_custom_call.1} parent=1 // pred_region
      %s18 = ssub.s32 128, 128
      %19 = vsyncadd [#allocation3], %s18
      %s21 = sshll.u32 [#allocation2], 4
      %s22 = int_to_ptr.vmem [resolvable:$true] %s21
      %24 = dma.hbm_to_vmem [thread:$0]  %s0, 128, %s22, [#allocation3]
    $region5: #{tpu_custom_call.1} parent=1 // pred_fallthru
      _
    // Predicated region
    $region6: #{tpu_custom_call.1} parent=1 // pred_check
      _
    $region7: #{tpu_custom_call.1} parent=1 // pred_check_branch
      %26 = sbr.rel (0) target = $region9
    $region8: #{tpu_custom_call.1} parent=1 // pred_region
      %s28 = ssub.s32 512, 512
      %29 = vsyncadd [#allocation6], %s28
      %s30 = sshll.u32 [#allocation5], 4
      %s31 = int_to_ptr.vmem [resolvable:$true] %s30
      %36 = dma.hbm_to_vmem [thread:$0]  %s1, 512, %s31, [#allocation6], 128, 128, 8
    $region9: #{tpu_custom_call.1} parent=1 // pred_fallthru
      _
    // Predicated region
    $region10: #{tpu_custom_call.1} parent=1 // pred_check
      _
    $region11: #{tpu_custom_call.1} parent=1 // pred_check_branch
      %38 = sbr.rel (0) target = $region13
    $region12: #{tpu_custom_call.1} parent=1 // pred_region
      _
    $region13: #{tpu_custom_call.1} parent=1 // pred_fallthru
      _
    // Predicated region
    $region14: #{tpu_custom_call.1} parent=1 // pred_check
      _
    $region15: #{tpu_custom_call.1} parent=1 // pred_check_branch
      %40 = sbr.rel (0) target = $region17
    $region16: #{tpu_custom_call.1} parent=1 // pred_region
      %s42 = ssub.s32 2048, 2048
      %43 = vsyncadd [#allocation6], %s42
      %s44 = sshll.u32 [#allocation7], 4
      %s45 = int_to_ptr.vmem [resolvable:$true] %s44
      %50 = dma.hbm_to_vmem [thread:$0]  %s3, 2048, %s45, [#allocation6], 128, 128, 8
    $region17: #{tpu_custom_call.1} parent=1 // pred_fallthru
      _
    // Predicated region
    $region18: #{tpu_custom_call.1} parent=1 // pred_check
      _
    $region19: #{tpu_custom_call.1} parent=1 // pred_check_branch
      %52 = sbr.rel (0) target = $region21
    $region20: #{tpu_custom_call.1} parent=1 // pred_region
      _
    $region21: #{tpu_custom_call.1} parent=1 // pred_fallthru
      _
    // Predicated region
    $region22: #{tpu_custom_call.1} parent=1 // pred_check
      _
    $region23: #{tpu_custom_call.1} parent=1 // pred_check_branch
      %54 = sbr.rel (0) target = $region25
    $region24: #{tpu_custom_call.1} parent=1 // pred_region
      %s56 = ssub.s32 2048, 2048
      %57 = vsyncadd [#allocation9], %s56
      %s58 = sshll.u32 [#allocation8], 4
      %s59 = int_to_ptr.vmem [resolvable:$true] %s58
      %64 = dma.hbm_to_vmem [thread:$0]  %s5, 2048, %s59, [#allocation9], 128, 128, 8
    $region25: #{tpu_custom_call.1} parent=1 // pred_fallthru
      _
    // Predicated region
    $region26: #{tpu_custom_call.1} parent=1 // pred_check
      _
    $region27: #{tpu_custom_call.1} parent=1 // pred_check_branch
      %66 = sbr.rel (0) target = $region29
    $region28: #{tpu_custom_call.1} parent=1 // pred_region
      %67 = dma.done [#allocation3], 128
    $region29: #{tpu_custom_call.1} parent=1 // pred_fallthru
      _
    // Predicated region
    $region30: #{tpu_custom_call.1} parent=1 // pred_check
      _
    $region31: #{tpu_custom_call.1} parent=1 // pred_check_branch
      %69 = sbr.rel (0) target = $region33
    $region32: #{tpu_custom_call.1} parent=1 // pred_region
      %70 = dma.done [#allocation6], 512
    $region33: #{tpu_custom_call.1} parent=1 // pred_fallthru
      _
    // Predicated region
    $region34: #{tpu_custom_call.1} parent=1 // pred_check
      _
    $region35: #{tpu_custom_call.1} parent=1 // pred_check_branch
      %72 = sbr.rel (0) target = $region37
    $region36: #{tpu_custom_call.1} parent=1 // pred_region
      %73 = dma.done [#allocation6], 2048
    $region37: #{tpu_custom_call.1} parent=1 // pred_fallthru
      _
    // Predicated region
    $region38: #{tpu_custom_call.1} parent=1 // pred_check
      _
    $region39: #{tpu_custom_call.1} parent=1 // pred_check_branch
      %75 = sbr.rel (0) target = $region41
    $region40: #{tpu_custom_call.1} parent=1 // pred_region
      %76 = dma.done [#allocation9], 2048
    $region41: #{tpu_custom_call.1} parent=1 // pred_fallthru
      _
    %v77 = vld [vmem:[#allocation2] sm:$0xff]
    %v78 = vld [vmem:[#allocation5] sm:$0xff]
    %v79 = vld [vmem:[#allocation5 + $0x8] sm:$0xff]
    %v80 = vld [vmem:[#allocation5 + $0x10] sm:$0xff]
    %v81 = vld [vmem:[#allocation5 + $0x18] sm:$0xff]
    %v82 = vld [vmem:[%s2] sm:$0x1]
    %v84 = vlaneseq
    %v85 = vshrl.u32 %v84, 7
    %v86 = vsub.s32 0, %v85
    %v87 = vrot.slane %v82, %v86
    %vm89 = vcmask 261120
    %v91 = vsel %vm89, %v77, 0
    %93 = vmatprep.subr.mxu0 0.0
    %94 = vmatpush1.msra.mxu0 %v78
    %95 = vmatprep.subr.mxu0 0.0
    %96 = vmatpush1.msra.mxu0 %v79
    %97 = vmatprep.subr.mxu0 0.0
    %98 = vmatpush1.msra.mxu0 %v80
    %99 = vmatprep.subr.mxu0 0.0
    %100 = vmatpush1.msra.mxu0 %v81
    %101 = vmatprep.subr.mxu0 0.0
    %102 = vmatpush1.msra.mxu0 0.0
    %103 = vmatprep.subr.mxu0 0.0
    %104 = vmatpush1.msra.mxu0 0.0
    %105 = vmatprep.subr.mxu0 0.0
    %106 = vmatpush1.msra.mxu0 0.0
    %107 = vmatprep.subr.mxu0 0.0
    %108 = vmatpush1.msra.mxu0 0.0
    %109 = vmatprep.subr.mxu0 0.0
    %110 = vmatpush1.msra.mxu0 0.0
    %111 = vmatprep.subr.mxu0 0.0
    %112 = vmatpush1.msra.mxu0 0.0
    %113 = vmatprep.subr.mxu0 0.0
    %114 = vmatpush1.msra.mxu0 0.0
    %115 = vmatprep.subr.mxu0 0.0
    %116 = vmatpush1.msra.mxu0 0.0
    %117 = vmatprep.subr.mxu0 0.0
    %118 = vmatpush1.msra.mxu0 0.0
    %119 = vmatprep.subr.mxu0 0.0
    %120 = vmatpush1.msra.mxu0 0.0
    %121 = vmatprep.subr.mxu0 0.0
    %122 = vmatpush1.msra.mxu0 0.0
    %123 = vmatprep.subr.mxu0 0.0
    %124 = vmatpush1.msra.mxu0 0.0
    %125 = vmatprep.subr.mxu0 0.0
    %126 = vmatpush1.msra.mxu0 0.0
    %127 = vmatprep.subr.mxu0 0.0
    %128 = vmatpush1.msra.mxu0 0.0
    %129 = vmatprep.subr.mxu0 0.0
    %130 = vmatpush1.msra.mxu0 0.0
    %131 = vmatprep.subr.mxu0 0.0
    %132 = vmatpush1.msra.mxu0 0.0
    %133 = vmatprep.subr.mxu0 0.0
    %134 = vmatpush1.msra.mxu0 0.0
    %135 = vmatprep.subr.mxu0 0.0
    %136 = vmatpush1.msra.mxu0 0.0
    %137 = vmatprep.subr.mxu0 0.0
    %138 = vmatpush1.msra.mxu0 0.0
    %139 = vmatprep.subr.mxu0 0.0
    %140 = vmatpush1.msra.mxu0 0.0
    %141 = vmatprep.subr.mxu0 0.0
    %142 = vmatpush1.msra.mxu0 0.0
    %143 = vmatprep.subr.mxu0 0.0
    %144 = vmatpush1.msra.mxu0 0.0
    %145 = vmatprep.subr.mxu0 0.0
    %146 = vmatpush1.msra.mxu0 0.0
    %147 = vmatprep.subr.mxu0 0.0
    %148 = vmatpush1.msra.mxu0 0.0
    %149 = vmatprep.subr.mxu0 0.0
    %150 = vmatpush1.msra.mxu0 0.0
    %151 = vmatprep.subr.mxu0 0.0
    %152 = vmatpush1.msra.mxu0 0.0
    %153 = vmatprep.subr.mxu0 0.0
    %154 = vmatpush1.msra.mxu0 0.0
    %155 = vmatprep.subr.mxu0 0.0
    %156 = vmatpush1.msra.mxu0 0.0
    %157 = vmatprep.mubr.f32.mxu0 0.0
    %158 = vmatmul.mubr.f32.gmra.mrb[0].mxu0 %v91
    %v159 = vpop.f32.mrb[0].mxu0
    %v160 = vadd.f32 %v87, %v159
    %v161 = vpop.f32.mrb[0].mxu0
    %162 = vdwg.mxu0
    %v163 = vmax.f32 %v160, 0.0
    %v164 = vld [vmem:[#allocation7] sm:$0xff]
    %v165 = vld [vmem:[#allocation7 + $0x8] sm:$0xff]
    %v166 = vld [vmem:[#allocation7 + $0x10] sm:$0xff]
    %v167 = vld [vmem:[#allocation7 + $0x18] sm:$0xff]
    %v168 = vld [vmem:[#allocation7 + $0x20] sm:$0xff]
    %v169 = vld [vmem:[#allocation7 + $0x28] sm:$0xff]
    %v170 = vld [vmem:[#allocation7 + $0x30] sm:$0xff]
    %v171 = vld [vmem:[#allocation7 + $0x38] sm:$0xff]
    %v172 = vld [vmem:[#allocation7 + $0x40] sm:$0xff]
    %v173 = vld [vmem:[#allocation7 + $0x48] sm:$0xff]
    %v174 = vld [vmem:[#allocation7 + $0x50] sm:$0xff]
    %v175 = vld [vmem:[#allocation7 + $0x58] sm:$0xff]
    %v176 = vld [vmem:[#allocation7 + $0x60] sm:$0xff]
    %v177 = vld [vmem:[#allocation7 + $0x68] sm:$0xff]
    %v178 = vld [vmem:[#allocation7 + $0x70] sm:$0xff]
    %v179 = vld [vmem:[#allocation7 + $0x78] sm:$0xff]
    %v180 = vld [vmem:[%s4] sm:$0x1]
    %v182 = vlaneseq
    %v183 = vshrl.u32 %v182, 7
    %v184 = vsub.s32 0, %v183
    %v185 = vrot.slane %v180, %v184
    %187 = vmatprep.subr.mxu0 0.0
    %188 = vmatpush1.msra.mxu0 %v164
    %189 = vmatprep.subr.mxu0 0.0
    %190 = vmatpush1.msra.mxu0 %v165
    %191 = vmatprep.subr.mxu0 0.0
    %192 = vmatpush1.msra.mxu0 %v166
    %193 = vmatprep.subr.mxu0 0.0
    %194 = vmatpush1.msra.mxu0 %v167
    %195 = vmatprep.subr.mxu0 0.0
    %196 = vmatpush1.msra.mxu0 %v168
    %197 = vmatprep.subr.mxu0 0.0
    %198 = vmatpush1.msra.mxu0 %v169
    %199 = vmatprep.subr.mxu0 0.0
    %200 = vmatpush1.msra.mxu0 %v170
    %201 = vmatprep.subr.mxu0 0.0
    %202 = vmatpush1.msra.mxu0 %v171
    %203 = vmatprep.subr.mxu0 0.0
    %204 = vmatpush1.msra.mxu0 %v172
    %205 = vmatprep.subr.mxu0 0.0
    %206 = vmatpush1.msra.mxu0 %v173
    %207 = vmatprep.subr.mxu0 0.0
    %208 = vmatpush1.msra.mxu0 %v174
    %209 = vmatprep.subr.mxu0 0.0
    %210 = vmatpush1.msra.mxu0 %v175
    %211 = vmatprep.subr.mxu0 0.0
    %212 = vmatpush1.msra.mxu0 %v176
    %213 = vmatprep.subr.mxu0 0.0
    %214 = vmatpush1.msra.mxu0 %v177
    %215 = vmatprep.subr.mxu0 0.0
    %216 = vmatpush1.msra.mxu0 %v178
    %217 = vmatprep.subr.mxu0 0.0
    %218 = vmatpush1.msra.mxu0 %v179
    %219 = vmatprep.subr.mxu0 0.0
    %220 = vmatpush1.msra.mxu0 0.0
    %221 = vmatprep.subr.mxu0 0.0
    %222 = vmatpush1.msra.mxu0 0.0
    %223 = vmatprep.subr.mxu0 0.0
    %224 = vmatpush1.msra.mxu0 0.0
    %225 = vmatprep.subr.mxu0 0.0
    %226 = vmatpush1.msra.mxu0 0.0
    %227 = vmatprep.subr.mxu0 0.0
    %228 = vmatpush1.msra.mxu0 0.0
    %229 = vmatprep.subr.mxu0 0.0
    %230 = vmatpush1.msra.mxu0 0.0
    %231 = vmatprep.subr.mxu0 0.0
    %232 = vmatpush1.msra.mxu0 0.0
    %233 = vmatprep.subr.mxu0 0.0
    %234 = vmatpush1.msra.mxu0 0.0
    %235 = vmatprep.subr.mxu0 0.0
    %236 = vmatpush1.msra.mxu0 0.0
    %237 = vmatprep.subr.mxu0 0.0
    %238 = vmatpush1.msra.mxu0 0.0
    %239 = vmatprep.subr.mxu0 0.0
    %240 = vmatpush1.msra.mxu0 0.0
    %241 = vmatprep.subr.mxu0 0.0
    %242 = vmatpush1.msra.mxu0 0.0
    %243 = vmatprep.subr.mxu0 0.0
    %244 = vmatpush1.msra.mxu0 0.0
    %245 = vmatprep.subr.mxu0 0.0
    %246 = vmatpush1.msra.mxu0 0.0
    %247 = vmatprep.subr.mxu0 0.0
    %248 = vmatpush1.msra.mxu0 0.0
    %249 = vmatprep.subr.mxu0 0.0
    %250 = vmatpush1.msra.mxu0 0.0
    %251 = vmatprep.mubr.f32.mxu0 0.0
    %252 = vmatmul.mubr.f32.gmra.mrb[0].mxu0 %v163
    %v253 = vpop.f32.mrb[0].mxu0
    %v254 = vadd.f32 %v185, %v253
    %v255 = vpop.f32.mrb[0].mxu0
    %256 = vdwg.mxu0
    %257 = vmax.xlane.f32.xlu0 %v254
    %v258 = vpop.xlane.xlu0 %257
    %v259 = vsub.f32 %v254, %v258
    %v260 = vmul.f32 %v259, 1.442695
    %v261 = vpow.pop %v260
    %v262 = vld [vmem:[#allocation8] sm:$0xff]
    %v263 = vld [vmem:[#allocation8 + $0x8] sm:$0xff]
    %v264 = vld [vmem:[#allocation8 + $0x10] sm:$0xff]
    %v265 = vld [vmem:[#allocation8 + $0x18] sm:$0xff]
    %v266 = vld [vmem:[#allocation8 + $0x20] sm:$0xff]
    %v267 = vld [vmem:[#allocation8 + $0x28] sm:$0xff]
    %v268 = vld [vmem:[#allocation8 + $0x30] sm:$0xff]
    %v269 = vld [vmem:[#allocation8 + $0x38] sm:$0xff]
    %v270 = vld [vmem:[#allocation8 + $0x40] sm:$0xff]
    %v271 = vld [vmem:[#allocation8 + $0x48] sm:$0xff]
    %v272 = vld [vmem:[#allocation8 + $0x50] sm:$0xff]
    %v273 = vld [vmem:[#allocation8 + $0x58] sm:$0xff]
    %v274 = vld [vmem:[#allocation8 + $0x60] sm:$0xff]
    %v275 = vld [vmem:[#allocation8 + $0x68] sm:$0xff]
    %v276 = vld [vmem:[#allocation8 + $0x70] sm:$0xff]
    %v277 = vld [vmem:[#allocation8 + $0x78] sm:$0xff]
    %278 = vmatprep.subr.mxu0 0.0
    %279 = vmatpush1.msra.mxu0 %v262
    %280 = vmatprep.subr.mxu0 0.0
    %281 = vmatpush1.msra.mxu0 %v263
    %282 = vmatprep.subr.mxu0 0.0
    %283 = vmatpush1.msra.mxu0 %v264
    %284 = vmatprep.subr.mxu0 0.0
    %285 = vmatpush1.msra.mxu0 %v265
    %286 = vmatprep.subr.mxu0 0.0
    %287 = vmatpush1.msra.mxu0 %v266
    %288 = vmatprep.subr.mxu0 0.0
    %289 = vmatpush1.msra.mxu0 %v267
    %290 = vmatprep.subr.mxu0 0.0
    %291 = vmatpush1.msra.mxu0 %v268
    %292 = vmatprep.subr.mxu0 0.0
    %293 = vmatpush1.msra.mxu0 %v269
    %294 = vmatprep.subr.mxu0 0.0
    %295 = vmatpush1.msra.mxu0 %v270
    %296 = vmatprep.subr.mxu0 0.0
    %297 = vmatpush1.msra.mxu0 %v271
    %298 = vmatprep.subr.mxu0 0.0
    %299 = vmatpush1.msra.mxu0 %v272
    %300 = vmatprep.subr.mxu0 0.0
    %301 = vmatpush1.msra.mxu0 %v273
    %302 = vmatprep.subr.mxu0 0.0
    %303 = vmatpush1.msra.mxu0 %v274
    %304 = vmatprep.subr.mxu0 0.0
    %305 = vmatpush1.msra.mxu0 %v275
    %306 = vmatprep.subr.mxu0 0.0
    %307 = vmatpush1.msra.mxu0 %v276
    %308 = vmatprep.subr.mxu0 0.0
    %309 = vmatpush1.msra.mxu0 %v277
    %310 = vmatprep.subr.mxu0 0.0
    %311 = vmatpush1.msra.mxu0 0.0
    %312 = vmatprep.subr.mxu0 0.0
    %313 = vmatpush1.msra.mxu0 0.0
    %314 = vmatprep.subr.mxu0 0.0
    %315 = vmatpush1.msra.mxu0 0.0
    %316 = vmatprep.subr.mxu0 0.0
    %317 = vmatpush1.msra.mxu0 0.0
    %318 = vmatprep.subr.mxu0 0.0
    %319 = vmatpush1.msra.mxu0 0.0
    %320 = vmatprep.subr.mxu0 0.0
    %321 = vmatpush1.msra.mxu0 0.0
    %322 = vmatprep.subr.mxu0 0.0
    %323 = vmatpush1.msra.mxu0 0.0
    %324 = vmatprep.subr.mxu0 0.0
    %325 = vmatpush1.msra.mxu0 0.0
    %326 = vmatprep.subr.mxu0 0.0
    %327 = vmatpush1.msra.mxu0 0.0
    %328 = vmatprep.subr.mxu0 0.0
    %329 = vmatpush1.msra.mxu0 0.0
    %330 = vmatprep.subr.mxu0 0.0
    %331 = vmatpush1.msra.mxu0 0.0
    %332 = vmatprep.subr.mxu0 0.0
    %333 = vmatpush1.msra.mxu0 0.0
    %334 = vmatprep.subr.mxu0 0.0
    %335 = vmatpush1.msra.mxu0 0.0
    %336 = vmatprep.subr.mxu0 0.0
    %337 = vmatpush1.msra.mxu0 0.0
    %338 = vmatprep.subr.mxu0 0.0
    %339 = vmatpush1.msra.mxu0 0.0
    %340 = vmatprep.subr.mxu0 0.0
    %341 = vmatpush1.msra.mxu0 0.0
    %342 = vmatprep.mubr.f32.mxu0 0.0
    %343 = vmatmul.mubr.f32.gmra.mrb[0].mxu0 %v261
    %v344 = vpop.f32.mrb[0].mxu0
    %v345 = vadd.f32 0.0, %v344
    %v346 = vpop.f32.mrb[0].mxu0
    %347 = vdwg.mxu0
    %v348 = vrcp.pop %v345
    %v349 = vmul.f32 %v261, %v348
    %350 = vst [vmem:[#allocation10] sm:$0xff] %v349
    // Predicated region
    $region42: #{tpu_custom_call.1} parent=1 // pred_check
      _
    $region43: #{tpu_custom_call.1} parent=1 // pred_check_branch
      %352 = sbr.rel (0) target = $region45
    $region44: #{tpu_custom_call.1} parent=1 // pred_region
      %s354 = ssub.s32 128, 128
      %355 = vsyncadd [#allocation4], %s354
      %s357 = sshll.u32 [#allocation10], 4
      %s358 = int_to_ptr.vmem [resolvable:$true] %s357
      %360 = dma.vmem_to_hbm [thread:$0]  %s358, 128, %s6, [#allocation4]
    $region45: #{tpu_custom_call.1} parent=1 // pred_fallthru
      _
    // Predicated region
    $region46: #{tpu_custom_call.1} parent=1 // pred_check
      _
    $region47: #{tpu_custom_call.1} parent=1 // pred_check_branch
      %362 = sbr.rel (0) target = $region49
    $region48: #{tpu_custom_call.1} parent=1 // pred_region
      %363 = dma.done [#allocation4], 128
    $region49: #{tpu_custom_call.1} parent=1 // pred_fallthru
      _
    %364 = vsyncpa [#allocation3], 1
    %365 = vsyncpa [#allocation6], 1
    %366 = vsyncpa [#allocation9], 1
    %367 = vsyncpa [#allocation4], 1

</llo_original>
